<compile_context>
chip_gen: v5e
topology: v5e:2x2
jax: 0.10.0
libtpu: 0.0.40
codegen_flags: <defaults>
</compile_context>

<pallas_src>
import functools

import jax
import jax.numpy as jnp
from jax.experimental import pallas as pl
from jax.experimental.pallas import tpu as pltpu

_LANE = 128
_SLAB_BYTES = 64 * 1024          # per-slab vreg working-set target
_BLOCK_BYTES = 4 * 1024 * 1024   # per-grid-step HBM block target


def _cdiv(a, b):
    return -(-a // b)


def _fill_value(dtype):
    if jnp.issubdtype(dtype, jnp.floating):
        return float("-inf")
    if jnp.issubdtype(dtype, jnp.bool_):
        return False
    return int(jnp.iinfo(dtype).min)


@jax.jit
def _per_channel_max(x_ncr):
    """x_ncr: (N, C, HW) native dtype -> per-channel max over (N, HW) as (C,) f32."""
    N, C, HW = x_ncr.shape
    dtype = x_ncr.dtype
    itemsize = dtype.itemsize
    fill = _fill_value(dtype)

    # ---------------- tiling plan (static under jit) ----------------
    hw_pad = _cdiv(HW, _LANE) * _LANE
    tile = max(_LANE, (_SLAB_BYTES // max(1, C * itemsize)) // _LANE * _LANE)
    tile = min(tile, hw_pad)
    grid_k = _cdiv(HW, tile)

    nb = max(1, _BLOCK_BYTES // max(1, C * tile * itemsize))
    nb = min(nb, N)
    if N >= 2:
        nb = min(nb, _cdiv(N, 2))          # keep >=2 N-blocks for megacore
    R = max(1, min(nb, _SLAB_BYTES // max(1, C * tile * itemsize)))
    nb = max(R, (nb // R) * R)             # nb is a multiple of R
    n_slabs = nb // R
    grid_n = _cdiv(N, nb)

    n_chunks = tile // _LANE
    ragged_k = (HW % tile) != 0            # last k block has padded lanes
    ragged_n = (N % nb) != 0               # last n block has padded rows

    def kernel(x_ref, o_ref):
        n = pl.program_id(0)
        k = pl.program_id(1)

        # Fresh lane-dense partial accumulator for every n block.
        @pl.when(k == 0)
        def _init():
            o_ref[...] = jnp.full((1, C, _LANE), fill, dtype=dtype)

        def run(mask_rows, mask_lanes):
            rows_valid = N - n * nb        # only meaningful on the tail n block

            def load_slab(i):
                if n_slabs == 1:
                    slab = x_ref[...]                       # (R==nb, C, tile)
                else:
                    start = pl.multiple_of(i * R, R)
                    slab = x_ref[pl.ds(start, R), :, :]     # (R, C, tile)
                if mask_rows:
                    ridx = i * R + jax.lax.broadcasted_iota(
                        jnp.int32, (R, C, tile), 0)
                    slab = jnp.where(ridx < rows_valid, slab,
                                     jnp.asarray(fill, dtype=dtype))
                return slab

            if n_slabs == 1:
                acc = load_slab(0)
            else:
                # (R, C, tile) carry => many independent per-vreg max chains.
                acc = jax.lax.fori_loop(
                    1, n_slabs,
                    lambda i, a: jnp.maximum(a, load_slab(i)),
                    load_slab(0))

            m = acc[0] if R == 1 else jnp.max(acc, axis=0)    # (C, tile), VPU only

            if mask_lanes:
                cols = k * tile + jax.lax.broadcasted_iota(
                    jnp.int32, (C, tile), 1)
                m = jnp.where(cols < HW, m, jnp.asarray(fill, dtype=dtype))

            # Pairwise tree over 128-lane chunks -> (C, 128): pure VPU, short chain.
            chunks = [m[:, j * _LANE:(j + 1) * _LANE] for j in range(n_chunks)]
            while len(chunks) > 1:
                nxt = [jnp.maximum(a, b)
                       for a, b in zip(chunks[0::2], chunks[1::2])]
                if len(chunks) % 2:
                    nxt.append(chunks[-1])
                chunks = nxt
            o_ref[0] = jnp.maximum(o_ref[0], chunks[0])

        # Tail-only masking: steady-state blocks take the unmasked path.
        if ragged_n:
            row_opts = [(n < grid_n - 1, False), (n == grid_n - 1, True)]
        else:
            row_opts = [(None, False)]
        if ragged_k and grid_k > 1:
            lane_opts = [(k < grid_k - 1, False), (k == grid_k - 1, True)]
        else:
            lane_opts = [(None, ragged_k)]   # grid_k == 1 & ragged -> always mask

        for rp, mr in row_opts:
            for lp, ml in lane_opts:
                preds = [p for p in (rp, lp) if p is not None]
                if not preds:
                    run(mr, ml)
                else:
                    cond = preds[0]
                    for p in preds[1:]:
                        cond = jnp.logical_and(cond, p)
                    pl.when(cond)(functools.partial(run, mr, ml))

    block_bytes = nb * C * tile * itemsize
    vmem_limit = int(min(32 * 1024 * 1024,
                         max(16 * 1024 * 1024,
                             3 * block_bytes + 4 * C * _LANE * itemsize
                             + (1 << 20))))

    partials = pl.pallas_call(
        kernel,
        out_shape=jax.ShapeDtypeStruct((grid_n, C, _LANE), dtype),
        grid_spec=pltpu.PrefetchScalarGridSpec(
            num_scalar_prefetch=0,
            grid=(grid_n, grid_k),
            in_specs=[pl.BlockSpec((nb, C, tile), lambda n, k: (n, 0, k))],
            out_specs=pl.BlockSpec((1, C, _LANE), lambda n, k: (n, 0, 0)),
        ),
        compiler_params=pltpu.CompilerParams(
            dimension_semantics=("parallel", "arbitrary"),
            vmem_limit_bytes=vmem_limit,
        ),
    )(x_ncr)

    # Tiny final reduction (lanes + n-blocks) and single f32 cast in plain XLA.
    return jnp.max(partials, axis=(0, 2)).astype(jnp.float32)


class PerChannelMaxObserver:
    """JAX/Pallas port: forward(x) returns x unchanged and updates self.max_val."""

    def __init__(self):
        # Mirrors torch.tensor([]) "empty" float32 buffer.
        self.max_val = jnp.zeros((0,), dtype=jnp.float32)

    def forward(self, x_orig):
        shape = x_orig.shape
        N, C = int(shape[0]), int(shape[1])
        hw = 1
        for d in shape[2:]:
            hw *= int(d)
        if N == 0 or hw == 0:
            # torch.amax over an empty reduction dim is an error; nothing to trace.
            return x_orig

        # Free, row-major reshape of (N, C, ...) -> (N, C, HW); no transpose,
        # no pad, no dtype cast: the kernel streams x exactly as stored in HBM.
        x_ncr = x_orig.reshape(N, C, hw)
        cur = _per_channel_max(x_ncr)      # (C,) float32

        if self.max_val.size == 0:
            self.max_val = cur
        else:
            self.max_val = jnp.maximum(cur, self.max_val.astype(jnp.float32))
        return x_orig


if __name__ == "__main__":
    key = jax.random.PRNGKey(0)
    k1, k2, k3 = jax.random.split(key, 3)

    # NCHW input, small shapes.
    x1 = jax.random.normal(k1, (2, 4, 16, 16), dtype=jnp.float32)
    x2 = jax.random.normal(k2, (2, 4, 16, 16), dtype=jnp.float32)

    obs = PerChannelMaxObserver()

    # First call: empty buffer branch.
    y1 = obs.forward(x1)
    mv1 = jax.block_until_ready(obs.max_val)

    # Second call: running-max branch.
    y2 = obs.forward(x2)
    mv2 = jax.block_until_ready(obs.max_val)

    # Reference in plain JAX (mirrors the torch code exactly).
    ref1 = jnp.max(jnp.moveaxis(x1, 1, 0).reshape(4, -1), axis=1)
    ref2 = jnp.maximum(jnp.max(jnp.moveaxis(x2, 1, 0).reshape(4, -1), axis=1), ref1)

    assert y1 is x1 and y2 is x2, "forward must return its input unchanged"
    assert jnp.allclose(mv1, ref1, atol=1e-6), (mv1, ref1)
    assert jnp.allclose(mv2, ref2, atol=1e-6), (mv2, ref2)

    # Ragged shape: exercises lane (HW % 128) and row (N % nb) tail masking.
    x3 = jax.random.normal(k3, (3, 5, 7, 9), dtype=jnp.float32)
    obs2 = PerChannelMaxObserver()
    obs2.forward(x3)
    mv3 = jax.block_until_ready(obs2.max_val)
    ref3 = jnp.max(jnp.moveaxis(x3, 1, 0).reshape(5, -1), axis=1)
    assert jnp.allclose(mv3, ref3, atol=1e-6), (mv3, ref3)

    print("KERNEL_OK")
</pallas_src>

<mosaic_0001>
module attributes {stable_mosaic.version = 11 : i64} {
  func.func @kernel(%arg0: i32, %arg1: i32, %arg2: memref<1x4x256xf32, #tpu.memory_space<vmem>>, %arg3: memref<1x4x128xf32, #tpu.memory_space<vmem>>) attributes {dimension_semantics = [#tpu.dimension_semantics<parallel>, #tpu.dimension_semantics<arbitrary>], iteration_bounds = array<i64: 2, 1>, scalar_prefetch = 0 : i64, scratch_operands = 0 : i64, tpu.core_type = #tpu.core_type<tc>, window_params = [{transform_indices = @transform_0, window_bounds = array<i64: 1, 4, 256>}, {transform_indices = @transform_1, window_bounds = array<i64: 1, 4, 128>}]} {
    %c0_i32 = arith.constant 0 : i32
    %0 = arith.cmpi eq, %arg1, %c0_i32 : i32
    %1 = arith.extui %0 : i1 to i32
    %c0_i32_0 = arith.constant 0 : i32
    %2 = arith.cmpi ne, %1, %c0_i32_0 : i32
    scf.if %2 {
      %cst = arith.constant 0xFF800000 : f32
      %14 = vector.broadcast %cst : f32 to vector<1x4x128xf32>
      %c0_9 = arith.constant 0 : index
      %c0_10 = arith.constant 0 : index
      %c0_11 = arith.constant 0 : index
      %15 = vector.load %arg3[%c0_9, %c0_10, %c0_11] : memref<1x4x128xf32, #tpu.memory_space<vmem>>, vector<1x4x128xf32>
      tpu.vector_store %arg3[%c0_9, %c0_10, %c0_11], %14 {strides = array<i32>} : memref<1x4x128xf32, #tpu.memory_space<vmem>>, vector<1x4x128xf32>,
    } else {
    }
    %c0 = arith.constant 0 : index
    %c0_1 = arith.constant 0 : index
    %c0_2 = arith.constant 0 : index
    %3 = vector.load %arg2[%c0, %c0_1, %c0_2] : memref<1x4x256xf32, #tpu.memory_space<vmem>>, vector<1x4x256xf32>
    %4 = vector.shape_cast %3 : vector<1x4x256xf32> to vector<4x256xf32>
    %5 = vector.extract_strided_slice %4 {offsets = [0, 0], sizes = [4, 128], strides = [1, 1]} : vector<4x256xf32> to vector<4x128xf32>
    %6 = vector.extract_strided_slice %4 {offsets = [0, 128], sizes = [4, 128], strides = [1, 1]} : vector<4x256xf32> to vector<4x128xf32>
    %7 = arith.maximumf %5, %6 : vector<4x128xf32>
    %c0_3 = arith.constant 0 : index
    %c0_4 = arith.constant 0 : index
    %c0_5 = arith.constant 0 : index
    %8 = vector.load %arg3[%c0_3, %c0_4, %c0_5] : memref<1x4x128xf32, #tpu.memory_space<vmem>>, vector<1x4x128xf32>
    %9 = vector.shape_cast %8 : vector<1x4x128xf32> to vector<4x128xf32>
    %10 = arith.maximumf %9, %7 : vector<4x128xf32>
    %c0_6 = arith.constant 0 : index
    %c0_7 = arith.constant 0 : index
    %c0_8 = arith.constant 0 : index
    %11 = vector.load %arg3[%c0_6, %c0_7, %c0_8] : memref<1x4x128xf32, #tpu.memory_space<vmem>>, vector<1x4x128xf32>
    %12 = vector.shape_cast %11 : vector<1x4x128xf32> to vector<4x128xf32>
    %13 = vector.shape_cast %10 : vector<4x128xf32> to vector<1x4x128xf32>
    tpu.vector_store %arg3[%c0_6, %c0_7, %c0_8], %13 {strides = array<i32>} : memref<1x4x128xf32, #tpu.memory_space<vmem>>, vector<1x4x128xf32>,
    return
  }
  func.func @transform_0(%arg0: i32, %arg1: i32) -> (i32, i32, i32) {
    %c0_i32 = arith.constant 0 : i32
    %c0_i32_0 = arith.constant 0 : i32
    return %arg0, %c0_i32, %arg1 : i32, i32, i32
  }
  func.func @transform_1(%arg0: i32, %arg1: i32) -> (i32, i32, i32) {
    %c0_i32 = arith.constant 0 : i32
    %c0_i32_0 = arith.constant 0 : i32
    %c0_i32_1 = arith.constant 0 : i32
    return %arg0, %c0_i32, %c0_i32_0 : i32, i32, i32
  }
}

</mosaic_0001>

<llo_original>
// kernel: _per_channel_max.1
$region0: #{_per_channel_max.1}
  #allocation0 [shape = 'u32[]', space=smem, size = 0x4, offset = 0x4, fixed_abs, tag = 'smem constant byte address 0x4 - core index']
  #allocation1 [shape = 'u32[72,128]{1,0:T(1,128)}', space=vmem, size = 0x9000, scoped, tag = 'internal scratch']
  %s0 = inlined_call_operand.hbm [shape: f32[2,4,256], index: 0, kind: input, shape index: {}]
  %s1 = inlined_call_operand.vmem [shape: f32[2,4,128], index: 1, kind: output, shape index: {}]
  %s2 = sld [smem:[#allocation0]]
  $region45: #{_per_channel_max.1} parent=0
    _
  %s4 = ssub.s32 1, %s2
  %s5 = scalar_select 0, %s4, %s2
  $region1: #{_per_channel_max.1} parent=0
    #allocation2 [shape = 'u8[8192]{0}', space=vmem, size = 0x2000, scoped, tag = 'input window, operand 0']
    #allocation3 [shape = 's32[2]{0}', space=sflag, size = 0x8, scoped, tag = 'scoped memory for _per_channel_max.1']
    %6 = vsyncpa [#allocation3], 0
    %s7 = scalar_lea.sflag [#allocation3], 1
    %8 = vsyncpa %s7, 0
    loop: start=0, step=1, limit=4
    $region2: #{_per_channel_max.1} parent=1 // loop_pre_header
      _
    $region3: #{_per_channel_max.1} parent=1 // loop_header
      %s10 = sphi 0, %s14
      %p11 = scmp.ge.s32.totalorder %s10, 4
      %s17 = sphi 0, %s29
      %s18 = sphi 0, %s25
      %s19 = sphi 0, %s17
      %s20 = sphi 0, %s18
      %s21 = sphi 0, %s19
      %s22 = sphi 0, %s20
      %s34 = sphi 0, %s36
      %s37 = sphi 0, %s34
      %s38 = sphi 0, %s37
      %s54 = sphi 0, %s38
      %s60 = sphi 0, %s62
      %s63 = sphi 0, %s60
      %s64 = sphi 0, %s63
      %s80 = sphi 0, %s64
    $region4: #{_per_channel_max.1} parent=1 // loop_header_branch
      %13 = sbr.rel (%p11) target = $region8
    $region5: #{_per_channel_max.1} parent=1 // loop_body
      %s15 = ssub.s32 %s10, 1
      %s16 = ssub.s32 %s10, 2
      %s23 = sadd.s32 1, %s18
      %p24 = scmp.ge.s32.totalorder %s23, 1
      %s25 = scalar_select %p24, 0, %s23
      %s26 = sadd.s32 1, %s17
      %s27 = scalar_select %p24, %s26, %s17
      %p28 = scmp.ge.s32.totalorder %s27, 2
      %s29 = scalar_select %p28, 0, %s27
      %s30 = ssub.s32 %s17, %s29
      %s31 = ssub.s32 %s18, %s25
      %s32 = sor.u32 %s30, %s31
      %p33 = scmp.eq.s32.totalorder %s32, 0
      %s35 = sadd.s32 %s34, 1
      %s36 = scalar_select %p33, %s34, %s35
      %p39 = pneg %p33
      %p40 = scmp.eq.s32.totalorder %s10, 1
      %p41 = por %p39, %p40
      %p42 = scmp.ne.s32.totalorder %s34, %s37
      %p43 = scmp.eq.s32.totalorder %s10, 0
      %p44 = por %p42, %p43
      %p45 = scmp.ne.s32.totalorder %s34, %s37
      %p46 = scmp.eq.s32.totalorder %s15, 1
      %p47 = por %p45, %p46
      %p48 = scmp.ne.s32.totalorder %s37, %s38
      %p49 = scmp.eq.s32.totalorder %s15, 0
      %p50 = por %p48, %p49
      %p51 = scmp.ne.s32.totalorder %s37, %s38
      %p52 = scmp.eq.s32.totalorder %s16, 1
      %p53 = por %p51, %p52
      %p55 = scmp.ne.s32.totalorder %s38, %s54
      %p56 = scmp.eq.s32.totalorder %s16, 0
      %p57 = por %p55, %p56
      %s58 = ssub.s32 %s17, %s29
      %p59 = scmp.eq.s32.totalorder %s58, 0
      %s61 = sadd.s32 %s60, 1
      %s62 = scalar_select %p59, %s60, %s61
      %p65 = pneg %p59
      %p66 = scmp.eq.s32.totalorder %s10, 1
      %p67 = por %p65, %p66
      %p68 = scmp.ne.s32.totalorder %s60, %s63
      %p69 = scmp.eq.s32.totalorder %s10, 0
      %p70 = por %p68, %p69
      %p71 = scmp.ne.s32.totalorder %s60, %s63
      %p72 = scmp.eq.s32.totalorder %s15, 1
      %p73 = por %p71, %p72
      %p74 = scmp.ne.s32.totalorder %s63, %s64
      %p75 = scmp.eq.s32.totalorder %s15, 0
      %p76 = por %p74, %p75
      %p77 = scmp.ne.s32.totalorder %s63, %s64
      %p78 = scmp.eq.s32.totalorder %s16, 1
      %p79 = por %p77, %p78
      %p81 = scmp.ne.s32.totalorder %s64, %s80
      %p82 = scmp.eq.s32.totalorder %s16, 0
      %p83 = por %p81, %p82
      %p84 = scmp.le.s32.totalorder 1, %s10
      %p85 = scmp.lt.s32.totalorder %s10, 3
      %p86 = pnand %p84, %p85
      %p87 = pneg %p86
      // Predicated region
      $region9: #{_per_channel_max.1} parent=5 // pred_check
        _
      $region10: #{_per_channel_max.1} parent=5 // pred_check_branch
        %89 = sbr.rel (%p86) target = $region12
      $region11: #{_per_channel_max.1} parent=5 // pred_region
        %s90 = ssub.s32 %s10, 1
      $region12: #{_per_channel_max.1} parent=5 // pred_fallthru
        _
      %p91 = scmp.lt.s32.totalorder %s10, 2
      // Predicated region
      $region13: #{_per_channel_max.1} parent=5 // pred_check
        %p92 = pneg %p91
      $region14: #{_per_channel_max.1} parent=5 // pred_check_branch
        %94 = sbr.rel (%p92) target = $region16
      $region15: #{_per_channel_max.1} parent=5 // pred_region
        // Predicated region
        $region17: #{_per_channel_max.1} parent=15 // pred_check
          %p95 = pneg %p44
        $region18: #{_per_channel_max.1} parent=15 // pred_check_branch
          %97 = sbr.rel (%p95) target = $region20
        $region19: #{_per_channel_max.1} parent=15 // pred_region
          %s98 = sand.u32 %s34, 1
          %s99 = scalar_lea.sflag [#allocation3], %s98
          %s100 = sand.u32 %s34, 1
          %s101 = smul.addr %s100, 8
          %s102 = scalar_lea.vmem [#allocation2], %s101
          %s103 = smul.u32 2, %s18
          %105 = vsyncadd %s99, 0
          %s106 = smul.addr %s17, 2
          %s107 = sadd.s32 %s103, %s106
          %s108 = smul.addr %s107, 4
          %s109 = scalar_lea.hbm %s0, %s108
          %s111 = sshll.u32 %s109, 4
          %s112 = int_to_ptr.hbm [resolvable:$true] %s111
          %s113 = sshll.u32 %s102, 4
          %s114 = int_to_ptr.vmem [resolvable:$true] %s113
          %116 = dma.hbm_to_vmem [thread:$0]  %s112, 128, %s114, %s99
        $region20: #{_per_channel_max.1} parent=15 // pred_fallthru
          _
      $region16: #{_per_channel_max.1} parent=5 // pred_fallthru
        _
      %p117 = scmp.le.s32.totalorder 1, %s10
      %p118 = scmp.lt.s32.totalorder %s10, 3
      %p119 = pnand %p117, %p118
      %p120 = pneg %p119
      // Predicated region
      $region21: #{_per_channel_max.1} parent=5 // pred_check
        _
      $region22: #{_per_channel_max.1} parent=5 // pred_check_branch
        %122 = sbr.rel (%p119) target = $region24
      $region23: #{_per_channel_max.1} parent=5 // pred_region
        %s123 = ssub.s32 %s10, 1
        %s124 = sand.u32 %s37, 1
        %s125 = scalar_lea.sflag [#allocation3], %s124
        %s126 = sand.u32 %s37, 1
        %s127 = smul.addr %s126, 8
        %s128 = scalar_lea.vmem [#allocation2], %s127
        // Predicated region
        $region25: #{_per_channel_max.1} parent=23 // pred_check
          %p129 = pneg %p50
        $region26: #{_per_channel_max.1} parent=23 // pred_check_branch
          %131 = sbr.rel (%p129) target = $region28
        $region27: #{_per_channel_max.1} parent=23 // pred_region
          %133 = dma.done %s125, 128
        $region28: #{_per_channel_max.1} parent=23 // pred_fallthru
          _
        %s134 = sand.u32 %s37, 1
        %s135 = scalar_lea.sflag [#allocation3], %s134
        %s136 = sand.u32 %s37, 1
        %s137 = smul.addr %s136, 8
        %s138 = scalar_lea.vmem [#allocation2], %s137
        %p139 = pneg %p50
        %p140 = pneg %p47
        %p141 = pneg %p76
        %p142 = pneg %p73
        %p143 = scmp.lt.s32.totalorder %s19, 1
        %s144 = scalar_select %p143, %s19, 1
        %s145 = smul.addr %s144, 4
        %s146 = scalar_lea.vmem %s1, %s145
        %s147 = smul.u32 2, %s20
        %p148 = scmp.lt.s32.totalorder %s19, 1
        %s149 = scalar_select %p148, %s19, 1
        %s150 = smul.addr %s149, 4
        %s151 = scalar_lea.vmem %s1, %s150
        %p152 = scmp.eq.s32.totalorder %s20, 0
        // Predicated region
        $region29: #{_per_channel_max.1} parent=23 // pred_check
          %p153 = pneg %p152
        $region30: #{_per_channel_max.1} parent=23 // pred_check_branch
          %155 = sbr.rel (%p153) target = $region32
        $region31: #{_per_channel_max.1} parent=23 // pred_region
          %156 = vst [vmem:[%s151] sm:$0xf] -inf
        $region32: #{_per_channel_max.1} parent=23 // pred_fallthru
          _
        %v157 = vld [vmem:[%s128] sm:$0xff]
        %v159 = vrot.slane %v157, 4
        %v161 = vmax.f32 %v157, %v159
        %v162 = vld [vmem:[%s151] sm:$0xf]
        %v163 = vmax.f32 %v162, %v161
        %164 = vst [vmem:[%s151] sm:$0xf] %v163
        %p165 = scmp.lt.s32.totalorder %s19, 1
        %s166 = scalar_select %p165, %s19, 1
        %s167 = smul.addr %s166, 4
        %s168 = scalar_lea.vmem %s1, %s167
        // Predicated region
        $region33: #{_per_channel_max.1} parent=23 // pred_check
          %p169 = pneg %p73
        $region34: #{_per_channel_max.1} parent=23 // pred_check_branch
          %171 = sbr.rel (%p169) target = $region36
        $region35: #{_per_channel_max.1} parent=23 // pred_region
          _
        $region36: #{_per_channel_max.1} parent=23 // pred_fallthru
          _
      $region24: #{_per_channel_max.1} parent=5 // pred_fallthru
        _
      %p172 = scmp.le.s32.totalorder 2, %s10
      // Predicated region
      $region37: #{_per_channel_max.1} parent=5 // pred_check
        %p173 = pneg %p172
      $region38: #{_per_channel_max.1} parent=5 // pred_check_branch
        %175 = sbr.rel (%p173) target = $region40
      $region39: #{_per_channel_max.1} parent=5 // pred_region
        %s176 = ssub.s32 %s10, 2
        // Predicated region
        $region41: #{_per_channel_max.1} parent=39 // pred_check
          %p177 = pneg %p79
        $region42: #{_per_channel_max.1} parent=39 // pred_check_branch
          %179 = sbr.rel (%p177) target = $region44
        $region43: #{_per_channel_max.1} parent=39 // pred_region
          %p180 = scmp.lt.s32.totalorder %s21, 1
          %s181 = scalar_select %p180, %s21, 1
          %s182 = smul.addr %s181, 4
          %s183 = scalar_lea.vmem %s1, %s182
        $region44: #{_per_channel_max.1} parent=39 // pred_fallthru
          _
      $region40: #{_per_channel_max.1} parent=5 // pred_fallthru
        _
    $region6: #{_per_channel_max.1} parent=1 // loop_footer
      %s14 = sadd.s32 1, %s10
    $region7: #{_per_channel_max.1} parent=1 // loop_footer_branch
      %9 = sbr.rel target = $region3
    $region8: #{_per_channel_max.1} parent=1 // loop_exit
      _
    %184 = vsyncpa [#allocation3], 1
    %s185 = scalar_lea.sflag [#allocation3], 1
    %186 = vsyncpa %s185, 1

</llo_original>
